<compile_context>
chip_gen: v6e
topology: v6e:2x2x1
jax: 0.10.0
libtpu: 0.0.40
codegen_flags: <defaults>
</compile_context>

<pallas_src>
import functools

import jax
import jax.numpy as jnp
from jax.experimental import pallas as pl
from jax.experimental.pallas import tpu as pltpu


def _round_up(x, m):
    return ((x + m - 1) // m) * m


def gru_encoder_kernel(x_ref, w_ref, b_ref, out_ref, *, seq_len, hidden,
                       hidden_pad, gate_pad):
    """GRU recurrence over pre-embedded, lane-padded inputs.

    x_ref   : VMEM (Tp, Hp)     bf16 embedded tokens (zero-padded rows/lanes)
    w_ref   : VMEM (2, Hp, Gp)  bf16 [W_ih^T ; W_hh^T], gates dense [n|z|r]
    b_ref   : VMEM (2, 1, Gp)   f32  row0 = b_ih + b_hh(z,r), row1 = b_hn lanes
    out_ref : VMEM (Tp, Hp)     f32  per-step hidden states
    """
    H, Hp, Gp = hidden, hidden_pad, gate_pad
    Tp = out_ref.shape[0]

    w_ih = w_ref[0]                       # (Hp, Gp)
    w_hh = w_ref[1]                       # (Hp, Gp)
    b_gi = b_ref[0]                       # (1, Gp)  folded input-side biases
    b_hn = b_ref[1]                       # (1, Gp)  b_hn on the n lanes [0, H)

    # Input-side gate pre-activations for ALL timesteps: one MXU pass hoisted
    # off the serial critical path; b_ih and the r/z parts of b_hh ride along.
    gi_all = jnp.dot(x_ref[...], w_ih,
                     preferred_element_type=jnp.float32) + b_gi   # (Tp, Gp) f32

    # Lane-validity mask keeps the padded lanes [H, Hp) of h exactly zero.
    lane = jax.lax.broadcasted_iota(jnp.int32, (1, Hp), 1)
    h_mask = (lane < H).astype(jnp.float32)

    shift_r = Gp - 2 * H          # moves the r block [2H,3H) onto lanes [0,H)
    shift_z = Gp - H              # moves the z block [H,2H)  onto lanes [0,H)

    h = jnp.zeros((1, Hp), jnp.float32)
    rows = []
    # Static unroll: T is small & static, gives the scheduler cross-iteration
    # visibility.  (For long T switch to lax.fori_loop(unroll=8) + chunked
    # 8-row stores to bound vreg live ranges.)
    for t in range(seq_len):
        gi = gi_all[t:t + 1, :]                                   # (1, Gp)
        # Single fused hidden-side matmul per step: one MXU push, 3 gates wide,
        # bf16 operands, f32 accumulate.  Padded rows of w_hh are zero so the
        # masked lanes of h never leak in.
        gh = jnp.dot(h.astype(w_hh.dtype), w_hh,
                     preferred_element_type=jnp.float32)          # (1, Gp)
        s = jax.nn.sigmoid(gi + gh)       # z valid at [H,2H), r valid at [2H,3H)
        # XLU lane rotations (free slot) replace unaligned gate slices.
        r_at_n = pltpu.roll(s, shift=shift_r, axis=1)             # r -> [0, H)
        n_all = jnp.tanh(gi + r_at_n * (gh + b_hn))               # n valid [0, H)
        z = pltpu.roll(s, shift=shift_z, axis=1)[:, :Hp]          # z -> [0, H)
        n = n_all[:, :Hp]
        # h = (1-z)*n + z*h rewritten with one fewer VPU multiply.
        h = (n + z * (h - n)) * h_mask                            # (1, Hp)
        rows.append(h)
    if Tp > seq_len:
        rows.append(jnp.zeros((Tp - seq_len, Hp), jnp.float32))

    # Single lane/sublane-dense store instead of T masked (1, H) stores.
    out_ref[...] = jnp.concatenate(rows, axis=0).astype(out_ref.dtype)


def pack_gru_params(w_ih, w_hh, b_ih, b_hh, matmul_dtype=jnp.bfloat16):
    """One-time packing of the static GRU weights (hoisted out of the forward).

    Gates are packed DENSELY along the lane axis in order [n | z | r]
    (offsets 0, H, 2H) with a single zero-pad to the next multiple of 128.
    """
    three_h, H = w_ih.shape
    assert three_h == 3 * H
    Hp = _round_up(H, 128)
    Gp = _round_up(3 * H, 128)

    def dense_wt(w):
        # PyTorch layout (3H, H), gate order [r,z,n].  Reverse gates to
        # [n,z,r], transpose each block, stack densely along lanes, pad once.
        wg = w.reshape(3, H, H)[::-1]                             # [n, z, r]
        d = jnp.transpose(wg, (2, 0, 1)).reshape(H, 3 * H)        # d[i, g*H+j]
        return jnp.pad(d, ((0, Hp - H), (0, Gp - 3 * H)))

    w_pack = jnp.stack([dense_wt(w_ih), dense_wt(w_hh)]).astype(matmul_dtype)

    b_ir, b_iz, b_in = jnp.split(b_ih.astype(jnp.float32), 3)
    b_hr, b_hz, b_hn = jnp.split(b_hh.astype(jnp.float32), 3)
    zeros = jnp.zeros((H,), jnp.float32)
    # Row 0 rides on the hoisted input GEMM (sigmoid args are pure sums, so the
    # r/z parts of b_hh fold in); row 1 is the b_hn that must stay inside r*(.).
    row0 = jnp.concatenate([b_in, b_iz + b_hz, b_ir + b_hr])
    row1 = jnp.concatenate([b_hn, zeros, zeros])
    b_pack = jnp.pad(jnp.stack([row0, row1])[:, None, :],
                     ((0, 0), (0, 0), (0, Gp - 3 * H)))           # (2, 1, Gp)
    return w_pack, b_pack


def encoder_forward(input_ids, emb_table, w_pack, b_pack, *, hidden_dim):
    """Matches Encoder.forward: returns (outputs (1,T,H), hidden (1,1,H))."""
    T = int(input_ids.shape[0])
    H = hidden_dim
    Hp = w_pack.shape[1]
    Gp = w_pack.shape[2]
    Tp = _round_up(T, 8)

    # Embedding gather in the wrapper: only T rows move HBM->VMEM; the (V, H)
    # table is never staged / double-buffered on-chip.
    x = emb_table[input_ids]                                      # (T, H) f32
    x_pad = jnp.pad(x, ((0, Tp - T), (0, Hp - H))).astype(w_pack.dtype)

    kernel = functools.partial(gru_encoder_kernel, seq_len=T, hidden=H,
                               hidden_pad=Hp, gate_pad=Gp)
    out_pad = pl.pallas_call(
        kernel,
        out_shape=jax.ShapeDtypeStruct((Tp, Hp), jnp.float32),
        in_specs=[pl.BlockSpec(memory_space=pltpu.MemorySpace.VMEM)] * 3,
        out_specs=pl.BlockSpec(memory_space=pltpu.MemorySpace.VMEM),
        compiler_params=pltpu.CompilerParams(
            vmem_limit_bytes=32 * 1024 * 1024),
    )(x_pad, w_pack, b_pack)

    outputs = out_pad[:T, :H]                                     # (T, H)
    hidden = outputs[T - 1]                                       # (H,)
    return outputs[None, :, :], hidden[None, None, :]


def reference_forward(input_ids, emb_table, w_ih, w_hh, b_ih, b_hh,
                      matmul_dtype=jnp.float32):
    """Pure-JAX reference with PyTorch GRU semantics (for verification)."""
    H = emb_table.shape[1]
    x_seq = emb_table[input_ids]                                  # (T, H)
    wi = w_ih.astype(matmul_dtype)
    wh = w_hh.astype(matmul_dtype)

    def step(h, x):
        gi = jnp.dot(x.astype(matmul_dtype), wi.T,
                     preferred_element_type=jnp.float32) + b_ih
        gh = jnp.dot(h.astype(matmul_dtype), wh.T,
                     preferred_element_type=jnp.float32) + b_hh
        i_r, i_z, i_n = jnp.split(gi, 3)
        h_r, h_z, h_n = jnp.split(gh, 3)
        r = jax.nn.sigmoid(i_r + h_r)
        z = jax.nn.sigmoid(i_z + h_z)
        n = jnp.tanh(i_n + r * h_n)
        h_new = (1.0 - z) * n + z * h
        return h_new, h_new

    h_last, outs = jax.lax.scan(step, jnp.zeros((H,), jnp.float32), x_seq)
    return outs[None], h_last[None, None]


if __name__ == "__main__":
    n_words = 50       # vocabulary size
    hidden_dim = 32    # small demo size (kernel handles any H, incl. module's 256)
    seq_len = 8

    key = jax.random.PRNGKey(0)
    k_emb, k_wih, k_whh, k_bih, k_bhh, k_ids = jax.random.split(key, 6)

    # nn.Embedding default init: N(0,1). nn.GRU default init: U(-k, k), k=1/sqrt(H).
    bound = 1.0 / (hidden_dim ** 0.5)
    emb_table = jax.random.normal(k_emb, (n_words, hidden_dim), jnp.float32)
    w_ih = jax.random.uniform(k_wih, (3 * hidden_dim, hidden_dim), jnp.float32, -bound, bound)
    w_hh = jax.random.uniform(k_whh, (3 * hidden_dim, hidden_dim), jnp.float32, -bound, bound)
    b_ih = jax.random.uniform(k_bih, (3 * hidden_dim,), jnp.float32, -bound, bound)
    b_hh = jax.random.uniform(k_bhh, (3 * hidden_dim,), jnp.float32, -bound, bound)

    input_sentence = jax.random.randint(k_ids, (seq_len,), 0, n_words, jnp.int32)

    # Weight packing hoisted out of the per-call path: pack once, reuse.
    w_pack, b_pack = pack_gru_params(w_ih, w_hh, b_ih, b_hh,
                                     matmul_dtype=jnp.bfloat16)

    fwd = jax.jit(encoder_forward, static_argnames=("hidden_dim",))
    outputs, hidden = fwd(input_sentence, emb_table, w_pack, b_pack,
                          hidden_dim=hidden_dim)
    outputs = jax.block_until_ready(outputs)
    hidden = jax.block_until_ready(hidden)

    assert outputs.shape == (1, seq_len, hidden_dim)
    assert hidden.shape == (1, 1, hidden_dim)

    # Structural check vs a matched-precision reference (bf16 matmul operands,
    # f32 accumulation & elementwise — same numerics as the kernel).
    ref_bf_out, ref_bf_hid = reference_forward(
        input_sentence, emb_table, w_ih, w_hh, b_ih, b_hh,
        matmul_dtype=jnp.bfloat16)
    assert jnp.allclose(outputs, ref_bf_out, rtol=5e-3, atol=5e-3), "bf16-ref outputs mismatch"
    assert jnp.allclose(hidden, ref_bf_hid, rtol=5e-3, atol=5e-3), "bf16-ref hidden mismatch"

    # End-to-end check vs the full-f32 PyTorch-semantics reference (tolerance
    # only loosened because the MXU operands are bf16).
    ref32_out, ref32_hid = reference_forward(
        input_sentence, emb_table, w_ih, w_hh, b_ih, b_hh,
        matmul_dtype=jnp.float32)
    assert jnp.allclose(outputs, ref32_out, rtol=5e-2, atol=5e-2), "f32-ref outputs mismatch"
    assert jnp.allclose(hidden, ref32_hid, rtol=5e-2, atol=5e-2), "f32-ref hidden mismatch"

    print("KERNEL_OK")
</pallas_src>

<mosaic_0001>
module attributes {stable_mosaic.version = 11 : i64} {
  func.func @gru_encoder_kernel(%arg0: memref<8x128xbf16, #tpu.memory_space<vmem>>, %arg1: memref<2x128x128xbf16, #tpu.memory_space<vmem>>, %arg2: memref<2x1x128xf32, #tpu.memory_space<vmem>>, %arg3: memref<8x128xf32, #tpu.memory_space<vmem>>) attributes {dimension_semantics = [], scalar_prefetch = 0 : i64, scratch_operands = 0 : i64, tpu.core_type = #tpu.core_type<tc>} {
    %c0 = arith.constant 0 : index
    %c0_0 = arith.constant 0 : index
    %c0_1 = arith.constant 0 : index
    %0 = vector.load %arg1[%c0, %c0_0, %c0_1] : memref<2x128x128xbf16, #tpu.memory_space<vmem>>, vector<1x128x128xbf16>
    %1 = vector.shape_cast %0 : vector<1x128x128xbf16> to vector<128x128xbf16>
    %c1 = arith.constant 1 : index
    %c0_2 = arith.constant 0 : index
    %c0_3 = arith.constant 0 : index
    %2 = vector.load %arg1[%c1, %c0_2, %c0_3] : memref<2x128x128xbf16, #tpu.memory_space<vmem>>, vector<1x128x128xbf16>
    %3 = vector.shape_cast %2 : vector<1x128x128xbf16> to vector<128x128xbf16>
    %c0_4 = arith.constant 0 : index
    %c0_5 = arith.constant 0 : index
    %c0_6 = arith.constant 0 : index
    %4 = vector.load %arg2[%c0_4, %c0_5, %c0_6] : memref<2x1x128xf32, #tpu.memory_space<vmem>>, vector<1x1x128xf32>
    %5 = vector.shape_cast %4 : vector<1x1x128xf32> to vector<1x128xf32>
    %c1_7 = arith.constant 1 : index
    %c0_8 = arith.constant 0 : index
    %c0_9 = arith.constant 0 : index
    %6 = vector.load %arg2[%c1_7, %c0_8, %c0_9] : memref<2x1x128xf32, #tpu.memory_space<vmem>>, vector<1x1x128xf32>
    %7 = vector.shape_cast %6 : vector<1x1x128xf32> to vector<1x128xf32>
    %c0_10 = arith.constant 0 : index
    %c0_11 = arith.constant 0 : index
    %8 = vector.load %arg0[%c0_10, %c0_11] : memref<8x128xbf16, #tpu.memory_space<vmem>>, vector<8x128xbf16>
    %cst = arith.constant dense<0.000000e+00> : vector<8x128xf32>
    %9 = tpu.matmul %8, %1, %cst {dimension_numbers = #tpu.dot_dimension_numbers<[1], [0], [0], [1], [0, 0, 1, 1], [], []>} : vector<8x128xbf16>, vector<128x128xbf16>, vector<8x128xf32> -> vector<8x128xf32>
    %10 = vector.broadcast %5 : vector<1x128xf32> to vector<8x128xf32>
    %11 = arith.addf %9, %10 : vector<8x128xf32>
    %12 = tpu.iota {dimensions = array<i32: 1>} : vector<1x128xi32>
    %c32_i32 = arith.constant 32 : i32
    %13 = vector.broadcast %c32_i32 : i32 to vector<1x128xi32>
    %14 = arith.cmpi slt, %12, %13 : vector<1x128xi32>
    %15 = arith.extui %14 : vector<1x128xi1> to vector<1x128xi32>
    %16 = arith.sitofp %15 : vector<1x128xi32> to vector<1x128xf32>
    %cst_12 = arith.constant 0.000000e+00 : f32
    %17 = vector.broadcast %cst_12 : f32 to vector<1x128xf32>
    %18 = vector.extract_strided_slice %11 {offsets = [0, 0], sizes = [1, 128], strides = [1, 1]} : vector<8x128xf32> to vector<1x128xf32>
    %19 = arith.truncf %17 : vector<1x128xf32> to vector<1x128xbf16>
    %cst_13 = arith.constant dense<0.000000e+00> : vector<1x128xf32>
    %20 = tpu.matmul %19, %3, %cst_13 {dimension_numbers = #tpu.dot_dimension_numbers<[1], [0], [0], [1], [0, 0, 1, 1], [], []>} : vector<1x128xbf16>, vector<128x128xbf16>, vector<1x128xf32> -> vector<1x128xf32>
    %21 = arith.addf %18, %20 : vector<1x128xf32>
    %22 = arith.negf %21 : vector<1x128xf32>
    %23 = math.exp %22 : vector<1x128xf32>
    %cst_14 = arith.constant 1.000000e+00 : f32
    %24 = vector.broadcast %cst_14 : f32 to vector<1x128xf32>
    %25 = arith.addf %24, %23 : vector<1x128xf32>
    %26 = arith.divf %24, %25 : vector<1x128xf32>
    %c64_i32 = arith.constant 64 : i32
    %27 = tpu.dynamic_rotate %26 by %c64_i32 dim 1 : vector<1x128xf32>, i32 -> vector<1x128xf32>
    %28 = arith.addf %20, %7 : vector<1x128xf32>
    %29 = arith.mulf %27, %28 : vector<1x128xf32>
    %30 = arith.addf %18, %29 : vector<1x128xf32>
    %31 = math.tanh %30 : vector<1x128xf32>
    %c96_i32 = arith.constant 96 : i32
    %32 = tpu.dynamic_rotate %26 by %c96_i32 dim 1 : vector<1x128xf32>, i32 -> vector<1x128xf32>
    %33 = arith.subf %17, %31 : vector<1x128xf32>
    %34 = arith.mulf %32, %33 : vector<1x128xf32>
    %35 = arith.addf %31, %34 : vector<1x128xf32>
    %36 = arith.mulf %35, %16 : vector<1x128xf32>
    %37 = vector.extract_strided_slice %11 {offsets = [1, 0], sizes = [1, 128], strides = [1, 1]} : vector<8x128xf32> to vector<1x128xf32>
    %38 = arith.truncf %36 : vector<1x128xf32> to vector<1x128xbf16>
    %cst_15 = arith.constant dense<0.000000e+00> : vector<1x128xf32>
    %39 = tpu.matmul %38, %3, %cst_15 {dimension_numbers = #tpu.dot_dimension_numbers<[1], [0], [0], [1], [0, 0, 1, 1], [], []>} : vector<1x128xbf16>, vector<128x128xbf16>, vector<1x128xf32> -> vector<1x128xf32>
    %40 = arith.addf %37, %39 : vector<1x128xf32>
    %41 = arith.negf %40 : vector<1x128xf32>
    %42 = math.exp %41 : vector<1x128xf32>
    %cst_16 = arith.constant 1.000000e+00 : f32
    %43 = vector.broadcast %cst_16 : f32 to vector<1x128xf32>
    %44 = arith.addf %43, %42 : vector<1x128xf32>
    %45 = arith.divf %43, %44 : vector<1x128xf32>
    %c64_i32_17 = arith.constant 64 : i32
    %46 = tpu.dynamic_rotate %45 by %c64_i32_17 dim 1 : vector<1x128xf32>, i32 -> vector<1x128xf32>
    %47 = arith.addf %39, %7 : vector<1x128xf32>
    %48 = arith.mulf %46, %47 : vector<1x128xf32>
    %49 = arith.addf %37, %48 : vector<1x128xf32>
    %50 = math.tanh %49 : vector<1x128xf32>
    %c96_i32_18 = arith.constant 96 : i32
    %51 = tpu.dynamic_rotate %45 by %c96_i32_18 dim 1 : vector<1x128xf32>, i32 -> vector<1x128xf32>
    %52 = arith.subf %36, %50 : vector<1x128xf32>
    %53 = arith.mulf %51, %52 : vector<1x128xf32>
    %54 = arith.addf %50, %53 : vector<1x128xf32>
    %55 = arith.mulf %54, %16 : vector<1x128xf32>
    %56 = vector.extract_strided_slice %11 {offsets = [2, 0], sizes = [1, 128], strides = [1, 1]} : vector<8x128xf32> to vector<1x128xf32>
    %57 = arith.truncf %55 : vector<1x128xf32> to vector<1x128xbf16>
    %cst_19 = arith.constant dense<0.000000e+00> : vector<1x128xf32>
    %58 = tpu.matmul %57, %3, %cst_19 {dimension_numbers = #tpu.dot_dimension_numbers<[1], [0], [0], [1], [0, 0, 1, 1], [], []>} : vector<1x128xbf16>, vector<128x128xbf16>, vector<1x128xf32> -> vector<1x128xf32>
    %59 = arith.addf %56, %58 : vector<1x128xf32>
    %60 = arith.negf %59 : vector<1x128xf32>
    %61 = math.exp %60 : vector<1x128xf32>
    %cst_20 = arith.constant 1.000000e+00 : f32
    %62 = vector.broadcast %cst_20 : f32 to vector<1x128xf32>
    %63 = arith.addf %62, %61 : vector<1x128xf32>
    %64 = arith.divf %62, %63 : vector<1x128xf32>
    %c64_i32_21 = arith.constant 64 : i32
    %65 = tpu.dynamic_rotate %64 by %c64_i32_21 dim 1 : vector<1x128xf32>, i32 -> vector<1x128xf32>
    %66 = arith.addf %58, %7 : vector<1x128xf32>
    %67 = arith.mulf %65, %66 : vector<1x128xf32>
    %68 = arith.addf %56, %67 : vector<1x128xf32>
    %69 = math.tanh %68 : vector<1x128xf32>
    %c96_i32_22 = arith.constant 96 : i32
    %70 = tpu.dynamic_rotate %64 by %c96_i32_22 dim 1 : vector<1x128xf32>, i32 -> vector<1x128xf32>
    %71 = arith.subf %55, %69 : vector<1x128xf32>
    %72 = arith.mulf %70, %71 : vector<1x128xf32>
    %73 = arith.addf %69, %72 : vector<1x128xf32>
    %74 = arith.mulf %73, %16 : vector<1x128xf32>
    %75 = vector.extract_strided_slice %11 {offsets = [3, 0], sizes = [1, 128], strides = [1, 1]} : vector<8x128xf32> to vector<1x128xf32>
    %76 = arith.truncf %74 : vector<1x128xf32> to vector<1x128xbf16>
    %cst_23 = arith.constant dense<0.000000e+00> : vector<1x128xf32>
    %77 = tpu.matmul %76, %3, %cst_23 {dimension_numbers = #tpu.dot_dimension_numbers<[1], [0], [0], [1], [0, 0, 1, 1], [], []>} : vector<1x128xbf16>, vector<128x128xbf16>, vector<1x128xf32> -> vector<1x128xf32>
    %78 = arith.addf %75, %77 : vector<1x128xf32>
    %79 = arith.negf %78 : vector<1x128xf32>
    %80 = math.exp %79 : vector<1x128xf32>
    %cst_24 = arith.constant 1.000000e+00 : f32
    %81 = vector.broadcast %cst_24 : f32 to vector<1x128xf32>
    %82 = arith.addf %81, %80 : vector<1x128xf32>
    %83 = arith.divf %81, %82 : vector<1x128xf32>
    %c64_i32_25 = arith.constant 64 : i32
    %84 = tpu.dynamic_rotate %83 by %c64_i32_25 dim 1 : vector<1x128xf32>, i32 -> vector<1x128xf32>
    %85 = arith.addf %77, %7 : vector<1x128xf32>
    %86 = arith.mulf %84, %85 : vector<1x128xf32>
    %87 = arith.addf %75, %86 : vector<1x128xf32>
    %88 = math.tanh %87 : vector<1x128xf32>
    %c96_i32_26 = arith.constant 96 : i32
    %89 = tpu.dynamic_rotate %83 by %c96_i32_26 dim 1 : vector<1x128xf32>, i32 -> vector<1x128xf32>
    %90 = arith.subf %74, %88 : vector<1x128xf32>
    %91 = arith.mulf %89, %90 : vector<1x128xf32>
    %92 = arith.addf %88, %91 : vector<1x128xf32>
    %93 = arith.mulf %92, %16 : vector<1x128xf32>
    %94 = vector.extract_strided_slice %11 {offsets = [4, 0], sizes = [1, 128], strides = [1, 1]} : vector<8x128xf32> to vector<1x128xf32>
    %95 = arith.truncf %93 : vector<1x128xf32> to vector<1x128xbf16>
    %cst_27 = arith.constant dense<0.000000e+00> : vector<1x128xf32>
    %96 = tpu.matmul %95, %3, %cst_27 {dimension_numbers = #tpu.dot_dimension_numbers<[1], [0], [0], [1], [0, 0, 1, 1], [], []>} : vector<1x128xbf16>, vector<128x128xbf16>, vector<1x128xf32> -> vector<1x128xf32>
    %97 = arith.addf %94, %96 : vector<1x128xf32>
    %98 = arith.negf %97 : vector<1x128xf32>
    %99 = math.exp %98 : vector<1x128xf32>
    %cst_28 = arith.constant 1.000000e+00 : f32
    %100 = vector.broadcast %cst_28 : f32 to vector<1x128xf32>
    %101 = arith.addf %100, %99 : vector<1x128xf32>
    %102 = arith.divf %100, %101 : vector<1x128xf32>
    %c64_i32_29 = arith.constant 64 : i32
    %103 = tpu.dynamic_rotate %102 by %c64_i32_29 dim 1 : vector<1x128xf32>, i32 -> vector<1x128xf32>
    %104 = arith.addf %96, %7 : vector<1x128xf32>
    %105 = arith.mulf %103, %104 : vector<1x128xf32>
    %106 = arith.addf %94, %105 : vector<1x128xf32>
    %107 = math.tanh %106 : vector<1x128xf32>
    %c96_i32_30 = arith.constant 96 : i32
    %108 = tpu.dynamic_rotate %102 by %c96_i32_30 dim 1 : vector<1x128xf32>, i32 -> vector<1x128xf32>
    %109 = arith.subf %93, %107 : vector<1x128xf32>
    %110 = arith.mulf %108, %109 : vector<1x128xf32>
    %111 = arith.addf %107, %110 : vector<1x128xf32>
    %112 = arith.mulf %111, %16 : vector<1x128xf32>
    %113 = vector.extract_strided_slice %11 {offsets = [5, 0], sizes = [1, 128], strides = [1, 1]} : vector<8x128xf32> to vector<1x128xf32>
    %114 = arith.truncf %112 : vector<1x128xf32> to vector<1x128xbf16>
    %cst_31 = arith.constant dense<0.000000e+00> : vector<1x128xf32>
    %115 = tpu.matmul %114, %3, %cst_31 {dimension_numbers = #tpu.dot_dimension_numbers<[1], [0], [0], [1], [0, 0, 1, 1], [], []>} : vector<1x128xbf16>, vector<128x128xbf16>, vector<1x128xf32> -> vector<1x128xf32>
    %116 = arith.addf %113, %115 : vector<1x128xf32>
    %117 = arith.negf %116 : vector<1x128xf32>
    %118 = math.exp %117 : vector<1x128xf32>
    %cst_32 = arith.constant 1.000000e+00 : f32
    %119 = vector.broadcast %cst_32 : f32 to vector<1x128xf32>
    %120 = arith.addf %119, %118 : vector<1x128xf32>
    %121 = arith.divf %119, %120 : vector<1x128xf32>
    %c64_i32_33 = arith.constant 64 : i32
    %122 = tpu.dynamic_rotate %121 by %c64_i32_33 dim 1 : vector<1x128xf32>, i32 -> vector<1x128xf32>
    %123 = arith.addf %115, %7 : vector<1x128xf32>
    %124 = arith.mulf %122, %123 : vector<1x128xf32>
    %125 = arith.addf %113, %124 : vector<1x128xf32>
    %126 = math.tanh %125 : vector<1x128xf32>
    %c96_i32_34 = arith.constant 96 : i32
    %127 = tpu.dynamic_rotate %121 by %c96_i32_34 dim 1 : vector<1x128xf32>, i32 -> vector<1x128xf32>
    %128 = arith.subf %112, %126 : vector<1x128xf32>
    %129 = arith.mulf %127, %128 : vector<1x128xf32>
    %130 = arith.addf %126, %129 : vector<1x128xf32>
    %131 = arith.mulf %130, %16 : vector<1x128xf32>
    %132 = vector.extract_strided_slice %11 {offsets = [6, 0], sizes = [1, 128], strides = [1, 1]} : vector<8x128xf32> to vector<1x128xf32>
    %133 = arith.truncf %131 : vector<1x128xf32> to vector<1x128xbf16>
    %cst_35 = arith.constant dense<0.000000e+00> : vector<1x128xf32>
    %134 = tpu.matmul %133, %3, %cst_35 {dimension_numbers = #tpu.dot_dimension_numbers<[1], [0], [0], [1], [0, 0, 1, 1], [], []>} : vector<1x128xbf16>, vector<128x128xbf16>, vector<1x128xf32> -> vector<1x128xf32>
    %135 = arith.addf %132, %134 : vector<1x128xf32>
    %136 = arith.negf %135 : vector<1x128xf32>
    %137 = math.exp %136 : vector<1x128xf32>
    %cst_36 = arith.constant 1.000000e+00 : f32
    %138 = vector.broadcast %cst_36 : f32 to vector<1x128xf32>
    %139 = arith.addf %138, %137 : vector<1x128xf32>
    %140 = arith.divf %138, %139 : vector<1x128xf32>
    %c64_i32_37 = arith.constant 64 : i32
    %141 = tpu.dynamic_rotate %140 by %c64_i32_37 dim 1 : vector<1x128xf32>, i32 -> vector<1x128xf32>
    %142 = arith.addf %134, %7 : vector<1x128xf32>
    %143 = arith.mulf %141, %142 : vector<1x128xf32>
    %144 = arith.addf %132, %143 : vector<1x128xf32>
    %145 = math.tanh %144 : vector<1x128xf32>
    %c96_i32_38 = arith.constant 96 : i32
    %146 = tpu.dynamic_rotate %140 by %c96_i32_38 dim 1 : vector<1x128xf32>, i32 -> vector<1x128xf32>
    %147 = arith.subf %131, %145 : vector<1x128xf32>
    %148 = arith.mulf %146, %147 : vector<1x128xf32>
    %149 = arith.addf %145, %148 : vector<1x128xf32>
    %150 = arith.mulf %149, %16 : vector<1x128xf32>
    %151 = vector.extract_strided_slice %11 {offsets = [7, 0], sizes = [1, 128], strides = [1, 1]} : vector<8x128xf32> to vector<1x128xf32>
    %152 = arith.truncf %150 : vector<1x128xf32> to vector<1x128xbf16>
    %cst_39 = arith.constant dense<0.000000e+00> : vector<1x128xf32>
    %153 = tpu.matmul %152, %3, %cst_39 {dimension_numbers = #tpu.dot_dimension_numbers<[1], [0], [0], [1], [0, 0, 1, 1], [], []>} : vector<1x128xbf16>, vector<128x128xbf16>, vector<1x128xf32> -> vector<1x128xf32>
    %154 = arith.addf %151, %153 : vector<1x128xf32>
    %155 = arith.negf %154 : vector<1x128xf32>
    %156 = math.exp %155 : vector<1x128xf32>
    %cst_40 = arith.constant 1.000000e+00 : f32
    %157 = vector.broadcast %cst_40 : f32 to vector<1x128xf32>
    %158 = arith.addf %157, %156 : vector<1x128xf32>
    %159 = arith.divf %157, %158 : vector<1x128xf32>
    %c64_i32_41 = arith.constant 64 : i32
    %160 = tpu.dynamic_rotate %159 by %c64_i32_41 dim 1 : vector<1x128xf32>, i32 -> vector<1x128xf32>
    %161 = arith.addf %153, %7 : vector<1x128xf32>
    %162 = arith.mulf %160, %161 : vector<1x128xf32>
    %163 = arith.addf %151, %162 : vector<1x128xf32>
    %164 = math.tanh %163 : vector<1x128xf32>
    %c96_i32_42 = arith.constant 96 : i32
    %165 = tpu.dynamic_rotate %159 by %c96_i32_42 dim 1 : vector<1x128xf32>, i32 -> vector<1x128xf32>
    %166 = arith.subf %150, %164 : vector<1x128xf32>
    %167 = arith.mulf %165, %166 : vector<1x128xf32>
    %168 = arith.addf %164, %167 : vector<1x128xf32>
    %169 = arith.mulf %168, %16 : vector<1x128xf32>
    %170 = tpu.concatenate %36, %55, %74, %93, %112, %131, %150, %169 in 0 : vector<1x128xf32>, vector<1x128xf32>, vector<1x128xf32>, vector<1x128xf32>, vector<1x128xf32>, vector<1x128xf32>, vector<1x128xf32>, vector<1x128xf32> -> vector<8x128xf32>
    %c0_43 = arith.constant 0 : index
    %c0_44 = arith.constant 0 : index
    %171 = vector.load %arg3[%c0_43, %c0_44] : memref<8x128xf32, #tpu.memory_space<vmem>>, vector<8x128xf32>
    tpu.vector_store %arg3[%c0_43, %c0_44], %170 {strides = array<i32>} : memref<8x128xf32, #tpu.memory_space<vmem>>, vector<8x128xf32>,
    return
  }
}

</mosaic_0001>

<llo_original>
// kernel: encoder_forward.1
$region0: #{encoder_forward.1}
  #allocation0 [shape = 'u32[]', space=smem, size = 0x4, offset = 0x4, fixed_abs, tag = 'smem constant byte address 0x4 - core index']
  #allocation1 [shape = 'u32[144,128]{1,0:T(1,128)}', space=vmem, size = 0x12000, scoped, tag = 'internal scratch']
  %s0 = inlined_call_operand.vmem [shape: bf16[8,128], index: 0, kind: input, shape index: {}]
  %s1 = inlined_call_operand.hbm [shape: bf16[2,128,128], index: 1, kind: input, shape index: {}]
  %s2 = inlined_call_operand.vmem [shape: f32[2,1,128], index: 2, kind: input, shape index: {}]
  %s3 = inlined_call_operand.vmem [shape: f32[8,128], index: 3, kind: output, shape index: {}]
  %s4 = sld [smem:[#allocation0]]
  $region26: #{encoder_forward.1} parent=0
    _
  %s6 = ssub.s32 1, %s4
  %s7 = scalar_select 0, %s6, %s4
  $region1: #{encoder_forward.1} parent=0
    #allocation2 [shape = 'u8[65536]{0}', space=vmem, size = 0x10000, scoped, tag = 'input window, operand 1, single buffered']
    #allocation3 [shape = 's32[1]{0}', space=sflag, size = 0x4, scoped, tag = 'scoped memory for encoder_forward.1']
    %8 = vsyncpa [#allocation3], 0
    // Predicated region
    $region2: #{encoder_forward.1} parent=1 // pred_check
      _
    $region3: #{encoder_forward.1} parent=1 // pred_check_branch
      %10 = sbr.rel (0) target = $region5
    $region4: #{encoder_forward.1} parent=1 // pred_region
      _
    $region5: #{encoder_forward.1} parent=1 // pred_fallthru
      _
    // Predicated region
    $region6: #{encoder_forward.1} parent=1 // pred_check
      _
    $region7: #{encoder_forward.1} parent=1 // pred_check_branch
      %12 = sbr.rel (0) target = $region9
    $region8: #{encoder_forward.1} parent=1 // pred_region
      %s14 = ssub.s32 2048, 2048
      %15 = vsyncadd [#allocation3], %s14
      %s16 = sshll.u32 [#allocation2], 4
      %s17 = int_to_ptr.vmem [resolvable:$true] %s16
      %22 = dma.hbm_to_vmem [thread:$0]  %s1, 2048, %s17, [#allocation3], 64, 64, 4
    $region9: #{encoder_forward.1} parent=1 // pred_fallthru
      _
    // Predicated region
    $region10: #{encoder_forward.1} parent=1 // pred_check
      _
    $region11: #{encoder_forward.1} parent=1 // pred_check_branch
      %24 = sbr.rel (0) target = $region13
    $region12: #{encoder_forward.1} parent=1 // pred_region
      _
    $region13: #{encoder_forward.1} parent=1 // pred_fallthru
      _
    // Predicated region
    $region14: #{encoder_forward.1} parent=1 // pred_check
      _
    $region15: #{encoder_forward.1} parent=1 // pred_check_branch
      %26 = sbr.rel (0) target = $region17
    $region16: #{encoder_forward.1} parent=1 // pred_region
      %27 = dma.done [#allocation3], 2048
    $region17: #{encoder_forward.1} parent=1 // pred_fallthru
      _
    %v29 = vld [vmem:[#allocation2] sm:$0xf]
    %v30 = vld [vmem:[#allocation2 + $0x4] sm:$0xf]
    %v31 = vld [vmem:[#allocation2 + $0x8] sm:$0xf]
    %v32 = vld [vmem:[#allocation2 + $0xc] sm:$0xf]
    %v33 = vld [vmem:[#allocation2 + $0x10] sm:$0xf]
    %v34 = vld [vmem:[#allocation2 + $0x14] sm:$0xf]
    %v35 = vld [vmem:[#allocation2 + $0x18] sm:$0xf]
    %v36 = vld [vmem:[#allocation2 + $0x1c] sm:$0xf]
    %v37 = vld [vmem:[#allocation2 + $0x20] sm:$0xf]
    %v38 = vld [vmem:[#allocation2 + $0x24] sm:$0xf]
    %v39 = vld [vmem:[#allocation2 + $0x28] sm:$0xf]
    %v40 = vld [vmem:[#allocation2 + $0x2c] sm:$0xf]
    %v41 = vld [vmem:[#allocation2 + $0x30] sm:$0xf]
    %v42 = vld [vmem:[#allocation2 + $0x34] sm:$0xf]
    %v43 = vld [vmem:[#allocation2 + $0x38] sm:$0xf]
    %v44 = vld [vmem:[#allocation2 + $0x3c] sm:$0xf]
    %s45 = scalar_lea.vmem [#allocation2], 64
    %v46 = vld [vmem:[%s45] sm:$0xf]
    %v47 = vld [vmem:[%s45 + $0x4] sm:$0xf]
    %v48 = vld [vmem:[%s45 + $0x8] sm:$0xf]
    %v49 = vld [vmem:[%s45 + $0xc] sm:$0xf]
    %v50 = vld [vmem:[%s45 + $0x10] sm:$0xf]
    %v51 = vld [vmem:[%s45 + $0x14] sm:$0xf]
    %v52 = vld [vmem:[%s45 + $0x18] sm:$0xf]
    %v53 = vld [vmem:[%s45 + $0x1c] sm:$0xf]
    %v54 = vld [vmem:[%s45 + $0x20] sm:$0xf]
    %v55 = vld [vmem:[%s45 + $0x24] sm:$0xf]
    %v56 = vld [vmem:[%s45 + $0x28] sm:$0xf]
    %v57 = vld [vmem:[%s45 + $0x2c] sm:$0xf]
    %v58 = vld [vmem:[%s45 + $0x30] sm:$0xf]
    %v59 = vld [vmem:[%s45 + $0x34] sm:$0xf]
    %v60 = vld [vmem:[%s45 + $0x38] sm:$0xf]
    %v61 = vld [vmem:[%s45 + $0x3c] sm:$0xf]
    %v62 = vld [vmem:[%s2] sm:$0x1]
    %s63 = scalar_lea.vmem %s2, 1
    %v64 = vld [vmem:[%s63] sm:$0x1]
    %v65 = vld [vmem:[%s0] sm:$0xf]
    %v67 = vlaneseq
    %v68 = vshrl.u32 %v67, 7
    %v69 = vsub.s32 0, %v68
    %v70 = vrot.slane %v62, %v69
    %v88 = vunpack.c.l.b16 %v29
    %v89 = vunpack.c.l.b16 %v30
    %v90 = vunpack.c.l.b16 %v31
    %v91 = vunpack.c.l.b16 %v32
    %v92 = vunpack.c.l.b16 %v33
    %v93 = vunpack.c.l.b16 %v34
    %v94 = vunpack.c.l.b16 %v35
    %v95 = vunpack.c.l.b16 %v36
    %v96 = vunpack.c.l.b16 %v37
    %v97 = vunpack.c.l.b16 %v38
    %v98 = vunpack.c.l.b16 %v39
    %v99 = vunpack.c.l.b16 %v40
    %v100 = vunpack.c.l.b16 %v41
    %v101 = vunpack.c.l.b16 %v42
    %v102 = vunpack.c.l.b16 %v43
    %v103 = vunpack.c.l.b16 %v44
    %v104 = vpack.c.b16 %v89, %v88
    %v105 = vpack.c.b16 %v91, %v90
    %v106 = vpack.c.b16 %v93, %v92
    %v107 = vpack.c.b16 %v95, %v94
    %v108 = vpack.c.b16 %v97, %v96
    %v109 = vpack.c.b16 %v99, %v98
    %v110 = vpack.c.b16 %v101, %v100
    %v111 = vpack.c.b16 %v103, %v102
    %120 = vmatprep.subr.bf16.mxu0 0
    %121 = vmatpush1.bf16.msra.mxu0 %v111
    %122 = vmatprep.subr.bf16.mxu0 0
    %123 = vmatpush1.bf16.msra.mxu0 %v110
    %124 = vmatprep.subr.bf16.mxu0 0
    %125 = vmatpush1.bf16.msra.mxu0 %v109
    %126 = vmatprep.subr.bf16.mxu0 0
    %127 = vmatpush1.bf16.msra.mxu0 %v108
    %128 = vmatprep.subr.bf16.mxu0 0
    %129 = vmatpush1.bf16.msra.mxu0 %v107
    %130 = vmatprep.subr.bf16.mxu0 0
    %131 = vmatpush1.bf16.msra.mxu0 %v106
    %132 = vmatprep.subr.bf16.mxu0 0
    %133 = vmatpush1.bf16.msra.mxu0 %v105
    %134 = vmatprep.subr.bf16.mxu0 0
    %135 = vmatpush1.bf16.msra.mxu0 %v104
    %136 = vmatprep.subr.bf16.mxu0 0
    %137 = vmatpush2.bf16.msra.mxu0 0
    %138 = vmatprep.subr.bf16.mxu0 0
    %139 = vmatpush2.bf16.msra.mxu0 0
    %140 = vmatprep.subr.bf16.mxu0 0
    %141 = vmatpush2.bf16.msra.mxu0 0
    %142 = vmatprep.subr.bf16.mxu0 0
    %143 = vmatpush2.bf16.msra.mxu0 0
    %144 = vmatprep.subr.bf16.mxu0 0
    %145 = vmatpush2.bf16.msra.mxu0 0
    %146 = vmatprep.subr.bf16.mxu0 0
    %147 = vmatpush2.bf16.msra.mxu0 0
    %148 = vmatprep.subr.bf16.mxu0 0
    %149 = vmatpush2.bf16.msra.mxu0 0
    %150 = vmatprep.subr.bf16.mxu0 0
    %151 = vmatpush2.bf16.msra.mxu0 0
    %152 = vmatprep.mubr.bf16.mxu0 0
    %153 = vmatmul.mubr.bf16.gmra.mxu0 %v65
    %v154 = vpop.f32.mrf.mxu0
    %v155 = vadd.f32 %v70, %v154
    %v156 = vpop.f32.mrf.mxu0
    %v157 = vpop.f32.mrf.mxu0
    %v158 = vpop.f32.mrf.mxu0
    %159 = vdwg.mxu0
    %v160 = vlaneseq
    %v161 = vand.u32 %v160, 127
    %vm162 = vcmp.lt.s32.totalorder %v161, 32
    %v163 = vsel %vm162, 1, 0
    %v164 = vcvt.s32.f32 %v163
    %v181 = vunpack.c.l.b16 %v46
    %v182 = vunpack.c.l.b16 %v47
    %v183 = vunpack.c.l.b16 %v48
    %v184 = vunpack.c.l.b16 %v49
    %v185 = vunpack.c.l.b16 %v50
    %v186 = vunpack.c.l.b16 %v51
    %v187 = vunpack.c.l.b16 %v52
    %v188 = vunpack.c.l.b16 %v53
    %v189 = vunpack.c.l.b16 %v54
    %v190 = vunpack.c.l.b16 %v55
    %v191 = vunpack.c.l.b16 %v56
    %v192 = vunpack.c.l.b16 %v57
    %v193 = vunpack.c.l.b16 %v58
    %v194 = vunpack.c.l.b16 %v59
    %v195 = vunpack.c.l.b16 %v60
    %v196 = vunpack.c.l.b16 %v61
    %v197 = vpack.c.b16 %v182, %v181
    %v198 = vpack.c.b16 %v184, %v183
    %v199 = vpack.c.b16 %v186, %v185
    %v200 = vpack.c.b16 %v188, %v187
    %v201 = vpack.c.b16 %v190, %v189
    %v202 = vpack.c.b16 %v192, %v191
    %v203 = vpack.c.b16 %v194, %v193
    %v204 = vpack.c.b16 %v196, %v195
    %213 = vmatprep.subr.bf16.mxu0 0
    %214 = vmatpush1.bf16.msra.mxu0 %v204
    %215 = vmatprep.subr.bf16.mxu0 0
    %216 = vmatpush1.bf16.msra.mxu0 %v203
    %217 = vmatprep.subr.bf16.mxu0 0
    %218 = vmatpush1.bf16.msra.mxu0 %v202
    %219 = vmatprep.subr.bf16.mxu0 0
    %220 = vmatpush1.bf16.msra.mxu0 %v201
    %221 = vmatprep.subr.bf16.mxu0 0
    %222 = vmatpush1.bf16.msra.mxu0 %v200
    %223 = vmatprep.subr.bf16.mxu0 0
    %224 = vmatpush1.bf16.msra.mxu0 %v199
    %225 = vmatprep.subr.bf16.mxu0 0
    %226 = vmatpush1.bf16.msra.mxu0 %v198
    %227 = vmatprep.subr.bf16.mxu0 0
    %228 = vmatpush1.bf16.msra.mxu0 %v197
    %229 = vmatprep.subr.bf16.mxu0 0
    %230 = vmatpush2.bf16.msra.mxu0 0
    %231 = vmatprep.subr.bf16.mxu0 0
    %232 = vmatpush2.bf16.msra.mxu0 0
    %233 = vmatprep.subr.bf16.mxu0 0
    %234 = vmatpush2.bf16.msra.mxu0 0
    %235 = vmatprep.subr.bf16.mxu0 0
    %236 = vmatpush2.bf16.msra.mxu0 0
    %237 = vmatprep.subr.bf16.mxu0 0
    %238 = vmatpush2.bf16.msra.mxu0 0
    %239 = vmatprep.subr.bf16.mxu0 0
    %240 = vmatpush2.bf16.msra.mxu0 0
    %241 = vmatprep.subr.bf16.mxu0 0
    %242 = vmatpush2.bf16.msra.mxu0 0
    %243 = vmatprep.subr.bf16.mxu0 0
    %244 = vmatpush2.bf16.msra.mxu0 0
    %245 = vmatprep.mubr.bf16.mxu0 0
    %246 = vmatmul.mubr.bf16.gmra.mxu0 0
    %v247 = vpop.f32.mrf.mxu0
    %v248 = vadd.f32 0.0, %v247
    %v249 = vpop.f32.mrf.mxu0
    %v250 = vpop.f32.mrf.mxu0
    %v251 = vpop.f32.mrf.mxu0
    %252 = vdwg.mxu0
    %v253 = vadd.f32 %v155, %v248
    %v254 = vxor.u32 %v253, 2147483648
    %v255 = vmul.f32 %v254, 1.442695
    %v256 = vpow.pop %v255
    %v257 = vadd.f32 %v256, 1.0
    %v258 = vrcp.pop %v257
    %v259 = vmul.f32 1.0, %v258
    %260 = vrot.lane.b32.xlu0 %v259, 64
    %v261 = vpop.permute.xlu0 %260
    %v262 = vadd.f32 %v248, %v64
    %v263 = vmul.f32 %v261, %v262
    %v264 = vadd.f32 %v155, %v263
    %v265 = vtanh.pop %v264
    %266 = vrot.lane.b32.xlu0 %v259, 96
    %v267 = vpop.permute.xlu0 %266
    %v268 = vsub.f32 0.0, %v265
    %v269 = vmul.f32 %v267, %v268
    %v270 = vadd.f32 %v265, %v269
    %v271 = vmul.f32 %v270, %v164
    %v272 = vpack.c.bf16 %v271, %v271
    %273 = vmatprep.subr.bf16.mxu0 0
    %274 = vmatpush1.bf16.msra.mxu0 %v204
    %275 = vmatprep.subr.bf16.mxu0 0
    %276 = vmatpush1.bf16.msra.mxu0 %v203
    %277 = vmatprep.subr.bf16.mxu0 0
    %278 = vmatpush1.bf16.msra.mxu0 %v202
    %279 = vmatprep.subr.bf16.mxu0 0
    %280 = vmatpush1.bf16.msra.mxu0 %v201
    %281 = vmatprep.subr.bf16.mxu0 0
    %282 = vmatpush1.bf16.msra.mxu0 %v200
    %283 = vmatprep.subr.bf16.mxu0 0
    %284 = vmatpush1.bf16.msra.mxu0 %v199
    %285 = vmatprep.subr.bf16.mxu0 0
    %286 = vmatpush1.bf16.msra.mxu0 %v198
    %287 = vmatprep.subr.bf16.mxu0 0
    %288 = vmatpush1.bf16.msra.mxu0 %v197
    %289 = vmatprep.subr.bf16.mxu0 0
    %290 = vmatpush2.bf16.msra.mxu0 0
    %291 = vmatprep.subr.bf16.mxu0 0
    %292 = vmatpush2.bf16.msra.mxu0 0
    %293 = vmatprep.subr.bf16.mxu0 0
    %294 = vmatpush2.bf16.msra.mxu0 0
    %295 = vmatprep.subr.bf16.mxu0 0
    %296 = vmatpush2.bf16.msra.mxu0 0
    %297 = vmatprep.subr.bf16.mxu0 0
    %298 = vmatpush2.bf16.msra.mxu0 0
    %299 = vmatprep.subr.bf16.mxu0 0
    %300 = vmatpush2.bf16.msra.mxu0 0
    %301 = vmatprep.subr.bf16.mxu0 0
    %302 = vmatpush2.bf16.msra.mxu0 0
    %303 = vmatprep.subr.bf16.mxu0 0
    %304 = vmatpush2.bf16.msra.mxu0 0
    %305 = vmatprep.mubr.bf16.mxu0 0
    %306 = vmatmul.mubr.bf16.gmra.mxu0 %v272
    %v307 = vpop.f32.mrf.mxu0
    %v308 = vadd.f32 0.0, %v307
    %v309 = vpop.f32.mrf.mxu0
    %v310 = vpop.f32.mrf.mxu0
    %v311 = vpop.f32.mrf.mxu0
    %312 = vdwg.mxu0
    %v314 = vrot.slane %v308, 7
    %v316 = vadd.f32 %v155, %v314
    %v317 = vxor.u32 %v316, 2147483648
    %v318 = vmul.f32 %v317, 1.442695
    %v319 = vpow.pop %v318
    %v320 = vadd.f32 %v319, 1.0
    %v321 = vrcp.pop %v320
    %v322 = vmul.f32 1.0, %v321
    %v324 = vrot.slane %v322, 1
    %326 = vrot.lane.b32.xlu0 %v324, 64
    %v327 = vpop.permute.xlu0 %326
    %v328 = vadd.f32 %v308, %v64
    %v329 = vmul.f32 %v327, %v328
    %v331 = vrot.slane %v329, 7
    %v333 = vadd.f32 %v155, %v331
    %v334 = vtanh.pop %v333
    %335 = vrot.lane.b32.xlu0 %v324, 96
    %v336 = vpop.permute.xlu0 %335
    %v338 = vrot.slane %v334, 1
    %v340 = vsub.f32 %v271, %v338
    %v341 = vmul.f32 %v336, %v340
    %v343 = vrot.slane %v341, 7
    %v345 = vadd.f32 %v334, %v343
    %v346 = vmul.f32 %v345, %v164
    %v347 = vpack.c.bf16 %v346, %v346
    %v349 = vshrl.u32 %v347, 16
    %352 = vmatprep.subr.bf16.mxu0 0
    %353 = vmatpush1.bf16.msra.mxu0 %v204
    %354 = vmatprep.subr.bf16.mxu0 0
    %355 = vmatpush1.bf16.msra.mxu0 %v203
    %356 = vmatprep.subr.bf16.mxu0 0
    %357 = vmatpush1.bf16.msra.mxu0 %v202
    %358 = vmatprep.subr.bf16.mxu0 0
    %359 = vmatpush1.bf16.msra.mxu0 %v201
    %360 = vmatprep.subr.bf16.mxu0 0
    %361 = vmatpush1.bf16.msra.mxu0 %v200
    %362 = vmatprep.subr.bf16.mxu0 0
    %363 = vmatpush1.bf16.msra.mxu0 %v199
    %364 = vmatprep.subr.bf16.mxu0 0
    %365 = vmatpush1.bf16.msra.mxu0 %v198
    %366 = vmatprep.subr.bf16.mxu0 0
    %367 = vmatpush1.bf16.msra.mxu0 %v197
    %368 = vmatprep.subr.bf16.mxu0 0
    %369 = vmatpush2.bf16.msra.mxu0 0
    %370 = vmatprep.subr.bf16.mxu0 0
    %371 = vmatpush2.bf16.msra.mxu0 0
    %372 = vmatprep.subr.bf16.mxu0 0
    %373 = vmatpush2.bf16.msra.mxu0 0
    %374 = vmatprep.subr.bf16.mxu0 0
    %375 = vmatpush2.bf16.msra.mxu0 0
    %376 = vmatprep.subr.bf16.mxu0 0
    %377 = vmatpush2.bf16.msra.mxu0 0
    %378 = vmatprep.subr.bf16.mxu0 0
    %379 = vmatpush2.bf16.msra.mxu0 0
    %380 = vmatprep.subr.bf16.mxu0 0
    %381 = vmatpush2.bf16.msra.mxu0 0
    %382 = vmatprep.subr.bf16.mxu0 0
    %383 = vmatpush2.bf16.msra.mxu0 0
    %384 = vmatprep.mubr.bf16.mxu0 0
    %385 = vmatmul.mubr.bf16.gmra.mxu0 %v349
    %v386 = vpop.f32.mrf.mxu0
    %v387 = vadd.f32 0.0, %v386
    %v388 = vpop.f32.mrf.mxu0
    %v389 = vpop.f32.mrf.mxu0
    %v390 = vpop.f32.mrf.mxu0
    %391 = vdwg.mxu0
    %v393 = vrot.slane %v387, 6
    %v395 = vadd.f32 %v155, %v393
    %v396 = vxor.u32 %v395, 2147483648
    %v397 = vmul.f32 %v396, 1.442695
    %v398 = vpow.pop %v397
    %v399 = vadd.f32 %v398, 1.0
    %v400 = vrcp.pop %v399
    %v401 = vmul.f32 1.0, %v400
    %v403 = vrot.slane %v401, 2
    %405 = vrot.lane.b32.xlu0 %v403, 64
    %v406 = vpop.permute.xlu0 %405
    %v407 = vadd.f32 %v387, %v64
    %v408 = vmul.f32 %v406, %v407
    %v410 = vrot.slane %v408, 6
    %v412 = vadd.f32 %v155, %v410
    %v413 = vtanh.pop %v412
    %414 = vrot.lane.b32.xlu0 %v403, 96
    %v415 = vpop.permute.xlu0 %414
    %v417 = vrot.slane %v413, 1
    %v419 = vsub.f32 %v346, %v417
    %v421 = vrot.slane %v419, 1
    %v423 = vmul.f32 %v415, %v421
    %v425 = vrot.slane %v423, 6
    %v427 = vadd.f32 %v413, %v425
    %v428 = vmul.f32 %v427, %v164
    %v429 = vpack.c.bf16 %v428, %v428
    %v431 = vrot.slane %v429, 1
    %433 = vmatprep.subr.bf16.mxu0 0
    %434 = vmatpush1.bf16.msra.mxu0 %v204
    %435 = vmatprep.subr.bf16.mxu0 0
    %436 = vmatpush1.bf16.msra.mxu0 %v203
    %437 = vmatprep.subr.bf16.mxu0 0
    %438 = vmatpush1.bf16.msra.mxu0 %v202
    %439 = vmatprep.subr.bf16.mxu0 0
    %440 = vmatpush1.bf16.msra.mxu0 %v201
    %441 = vmatprep.subr.bf16.mxu0 0
    %442 = vmatpush1.bf16.msra.mxu0 %v200
    %443 = vmatprep.subr.bf16.mxu0 0
    %444 = vmatpush1.bf16.msra.mxu0 %v199
    %445 = vmatprep.subr.bf16.mxu0 0
    %446 = vmatpush1.bf16.msra.mxu0 %v198
    %447 = vmatprep.subr.bf16.mxu0 0
    %448 = vmatpush1.bf16.msra.mxu0 %v197
    %449 = vmatprep.subr.bf16.mxu0 0
    %450 = vmatpush2.bf16.msra.mxu0 0
    %451 = vmatprep.subr.bf16.mxu0 0
    %452 = vmatpush2.bf16.msra.mxu0 0
    %453 = vmatprep.subr.bf16.mxu0 0
    %454 = vmatpush2.bf16.msra.mxu0 0
    %455 = vmatprep.subr.bf16.mxu0 0
    %456 = vmatpush2.bf16.msra.mxu0 0
    %457 = vmatprep.subr.bf16.mxu0 0
    %458 = vmatpush2.bf16.msra.mxu0 0
    %459 = vmatprep.subr.bf16.mxu0 0
    %460 = vmatpush2.bf16.msra.mxu0 0
    %461 = vmatprep.subr.bf16.mxu0 0
    %462 = vmatpush2.bf16.msra.mxu0 0
    %463 = vmatprep.subr.bf16.mxu0 0
    %464 = vmatpush2.bf16.msra.mxu0 0
    %465 = vmatprep.mubr.bf16.mxu0 0
    %466 = vmatmul.mubr.bf16.gmra.mxu0 %v431
    %v467 = vpop.f32.mrf.mxu0
    %v468 = vadd.f32 0.0, %v467
    %v469 = vpop.f32.mrf.mxu0
    %v470 = vpop.f32.mrf.mxu0
    %v471 = vpop.f32.mrf.mxu0
    %472 = vdwg.mxu0
    %v474 = vrot.slane %v468, 5
    %v476 = vadd.f32 %v155, %v474
    %v477 = vxor.u32 %v476, 2147483648
    %v478 = vmul.f32 %v477, 1.442695
    %v479 = vpow.pop %v478
    %v480 = vadd.f32 %v479, 1.0
    %v481 = vrcp.pop %v480
    %v482 = vmul.f32 1.0, %v481
    %v484 = vrot.slane %v482, 3
    %486 = vrot.lane.b32.xlu0 %v484, 64
    %v487 = vpop.permute.xlu0 %486
    %v488 = vadd.f32 %v468, %v64
    %v489 = vmul.f32 %v487, %v488
    %v491 = vrot.slane %v489, 5
    %v493 = vadd.f32 %v155, %v491
    %v494 = vtanh.pop %v493
    %495 = vrot.lane.b32.xlu0 %v484, 96
    %v496 = vpop.permute.xlu0 %495
    %v498 = vrot.slane %v494, 1
    %v500 = vsub.f32 %v428, %v498
    %v502 = vrot.slane %v500, 2
    %v504 = vmul.f32 %v496, %v502
    %v506 = vrot.slane %v504, 5
    %v508 = vadd.f32 %v494, %v506
    %v509 = vmul.f32 %v508, %v164
    %v510 = vpack.c.bf16 %v509, %v509
    %v512 = vshrl.u32 %v510, 16
    %v514 = vrot.slane %v512, 1
    %516 = vmatprep.subr.bf16.mxu0 0
    %517 = vmatpush1.bf16.msra.mxu0 %v204
    %518 = vmatprep.subr.bf16.mxu0 0
    %519 = vmatpush1.bf16.msra.mxu0 %v203
    %520 = vmatprep.subr.bf16.mxu0 0
    %521 = vmatpush1.bf16.msra.mxu0 %v202
    %522 = vmatprep.subr.bf16.mxu0 0
    %523 = vmatpush1.bf16.msra.mxu0 %v201
    %524 = vmatprep.subr.bf16.mxu0 0
    %525 = vmatpush1.bf16.msra.mxu0 %v200
    %526 = vmatprep.subr.bf16.mxu0 0
    %527 = vmatpush1.bf16.msra.mxu0 %v199
    %528 = vmatprep.subr.bf16.mxu0 0
    %529 = vmatpush1.bf16.msra.mxu0 %v198
    %530 = vmatprep.subr.bf16.mxu0 0
    %531 = vmatpush1.bf16.msra.mxu0 %v197
    %532 = vmatprep.subr.bf16.mxu0 0
    %533 = vmatpush2.bf16.msra.mxu0 0
    %534 = vmatprep.subr.bf16.mxu0 0
    %535 = vmatpush2.bf16.msra.mxu0 0
    %536 = vmatprep.subr.bf16.mxu0 0
    %537 = vmatpush2.bf16.msra.mxu0 0
    %538 = vmatprep.subr.bf16.mxu0 0
    %539 = vmatpush2.bf16.msra.mxu0 0
    %540 = vmatprep.subr.bf16.mxu0 0
    %541 = vmatpush2.bf16.msra.mxu0 0
    %542 = vmatprep.subr.bf16.mxu0 0
    %543 = vmatpush2.bf16.msra.mxu0 0
    %544 = vmatprep.subr.bf16.mxu0 0
    %545 = vmatpush2.bf16.msra.mxu0 0
    %546 = vmatprep.subr.bf16.mxu0 0
    %547 = vmatpush2.bf16.msra.mxu0 0
    %548 = vmatprep.mubr.bf16.mxu0 0
    %549 = vmatmul.mubr.bf16.gmra.mxu0 %v514
    %v550 = vpop.f32.mrf.mxu0
    %v551 = vadd.f32 0.0, %v550
    %v552 = vpop.f32.mrf.mxu0
    %v553 = vpop.f32.mrf.mxu0
    %v554 = vpop.f32.mrf.mxu0
    %555 = vdwg.mxu0
    %v557 = vrot.slane %v551, 4
    %v559 = vadd.f32 %v155, %v557
    %v560 = vxor.u32 %v559, 2147483648
    %v561 = vmul.f32 %v560, 1.442695
    %v562 = vpow.pop %v561
    %v563 = vadd.f32 %v562, 1.0
    %v564 = vrcp.pop %v563
    %v565 = vmul.f32 1.0, %v564
    %v567 = vrot.slane %v565, 4
    %569 = vrot.lane.b32.xlu0 %v567, 64
    %v570 = vpop.permute.xlu0 %569
    %v571 = vadd.f32 %v551, %v64
    %v572 = vmul.f32 %v570, %v571
    %v574 = vrot.slane %v572, 4
    %v576 = vadd.f32 %v155, %v574
    %v577 = vtanh.pop %v576
    %578 = vrot.lane.b32.xlu0 %v567, 96
    %v579 = vpop.permute.xlu0 %578
    %v581 = vrot.slane %v577, 1
    %v583 = vsub.f32 %v509, %v581
    %v585 = vrot.slane %v583, 3
    %v587 = vmul.f32 %v579, %v585
    %v589 = vrot.slane %v587, 4
    %v591 = vadd.f32 %v577, %v589
    %v592 = vmul.f32 %v591, %v164
    %v593 = vpack.c.bf16 %v592, %v592
    %v595 = vrot.slane %v593, 2
    %597 = vmatprep.subr.bf16.mxu0 0
    %598 = vmatpush1.bf16.msra.mxu0 %v204
    %599 = vmatprep.subr.bf16.mxu0 0
    %600 = vmatpush1.bf16.msra.mxu0 %v203
    %601 = vmatprep.subr.bf16.mxu0 0
    %602 = vmatpush1.bf16.msra.mxu0 %v202
    %603 = vmatprep.subr.bf16.mxu0 0
    %604 = vmatpush1.bf16.msra.mxu0 %v201
    %605 = vmatprep.subr.bf16.mxu0 0
    %606 = vmatpush1.bf16.msra.mxu0 %v200
    %607 = vmatprep.subr.bf16.mxu0 0
    %608 = vmatpush1.bf16.msra.mxu0 %v199
    %609 = vmatprep.subr.bf16.mxu0 0
    %610 = vmatpush1.bf16.msra.mxu0 %v198
    %611 = vmatprep.subr.bf16.mxu0 0
    %612 = vmatpush1.bf16.msra.mxu0 %v197
    %613 = vmatprep.subr.bf16.mxu0 0
    %614 = vmatpush2.bf16.msra.mxu0 0
    %615 = vmatprep.subr.bf16.mxu0 0
    %616 = vmatpush2.bf16.msra.mxu0 0
    %617 = vmatprep.subr.bf16.mxu0 0
    %618 = vmatpush2.bf16.msra.mxu0 0
    %619 = vmatprep.subr.bf16.mxu0 0
    %620 = vmatpush2.bf16.msra.mxu0 0
    %621 = vmatprep.subr.bf16.mxu0 0
    %622 = vmatpush2.bf16.msra.mxu0 0
    %623 = vmatprep.subr.bf16.mxu0 0
    %624 = vmatpush2.bf16.msra.mxu0 0
    %625 = vmatprep.subr.bf16.mxu0 0
    %626 = vmatpush2.bf16.msra.mxu0 0
    %627 = vmatprep.subr.bf16.mxu0 0
    %628 = vmatpush2.bf16.msra.mxu0 0
    %629 = vmatprep.mubr.bf16.mxu0 0
    %630 = vmatmul.mubr.bf16.gmra.mxu0 %v595
    %v631 = vpop.f32.mrf.mxu0
    %v632 = vadd.f32 0.0, %v631
    %v633 = vpop.f32.mrf.mxu0
    %v634 = vpop.f32.mrf.mxu0
    %v635 = vpop.f32.mrf.mxu0
    %636 = vdwg.mxu0
    %v638 = vrot.slane %v632, 3
    %v640 = vadd.f32 %v155, %v638
    %v641 = vxor.u32 %v640, 2147483648
    %v642 = vmul.f32 %v641, 1.442695
    %v643 = vpow.pop %v642
    %v644 = vadd.f32 %v643, 1.0
    %v645 = vrcp.pop %v644
    %v646 = vmul.f32 1.0, %v645
    %v648 = vrot.slane %v646, 5
    %650 = vrot.lane.b32.xlu0 %v648, 64
    %v651 = vpop.permute.xlu0 %650
    %v652 = vadd.f32 %v632, %v64
    %v653 = vmul.f32 %v651, %v652
    %v655 = vrot.slane %v653, 3
    %v657 = vadd.f32 %v155, %v655
    %v658 = vtanh.pop %v657
    %659 = vrot.lane.b32.xlu0 %v648, 96
    %v660 = vpop.permute.xlu0 %659
    %v662 = vrot.slane %v658, 1
    %v664 = vsub.f32 %v592, %v662
    %v666 = vrot.slane %v664, 4
    %v668 = vmul.f32 %v660, %v666
    %v670 = vrot.slane %v668, 3
    %v672 = vadd.f32 %v658, %v670
    %v673 = vmul.f32 %v672, %v164
    %v674 = vpack.c.bf16 %v673, %v673
    %v676 = vshrl.u32 %v674, 16
    %v678 = vrot.slane %v676, 2
    %680 = vmatprep.subr.bf16.mxu0 0
    %681 = vmatpush1.bf16.msra.mxu0 %v204
    %682 = vmatprep.subr.bf16.mxu0 0
    %683 = vmatpush1.bf16.msra.mxu0 %v203
    %684 = vmatprep.subr.bf16.mxu0 0
    %685 = vmatpush1.bf16.msra.mxu0 %v202
    %686 = vmatprep.subr.bf16.mxu0 0
    %687 = vmatpush1.bf16.msra.mxu0 %v201
    %688 = vmatprep.subr.bf16.mxu0 0
    %689 = vmatpush1.bf16.msra.mxu0 %v200
    %690 = vmatprep.subr.bf16.mxu0 0
    %691 = vmatpush1.bf16.msra.mxu0 %v199
    %692 = vmatprep.subr.bf16.mxu0 0
    %693 = vmatpush1.bf16.msra.mxu0 %v198
    %694 = vmatprep.subr.bf16.mxu0 0
    %695 = vmatpush1.bf16.msra.mxu0 %v197
    %696 = vmatprep.subr.bf16.mxu0 0
    %697 = vmatpush2.bf16.msra.mxu0 0
    %698 = vmatprep.subr.bf16.mxu0 0
    %699 = vmatpush2.bf16.msra.mxu0 0
    %700 = vmatprep.subr.bf16.mxu0 0
    %701 = vmatpush2.bf16.msra.mxu0 0
    %702 = vmatprep.subr.bf16.mxu0 0
    %703 = vmatpush2.bf16.msra.mxu0 0
    %704 = vmatprep.subr.bf16.mxu0 0
    %705 = vmatpush2.bf16.msra.mxu0 0
    %706 = vmatprep.subr.bf16.mxu0 0
    %707 = vmatpush2.bf16.msra.mxu0 0
    %708 = vmatprep.subr.bf16.mxu0 0
    %709 = vmatpush2.bf16.msra.mxu0 0
    %710 = vmatprep.subr.bf16.mxu0 0
    %711 = vmatpush2.bf16.msra.mxu0 0
    %712 = vmatprep.mubr.bf16.mxu0 0
    %713 = vmatmul.mubr.bf16.gmra.mxu0 %v678
    %v714 = vpop.f32.mrf.mxu0
    %v715 = vadd.f32 0.0, %v714
    %v716 = vpop.f32.mrf.mxu0
    %v717 = vpop.f32.mrf.mxu0
    %v718 = vpop.f32.mrf.mxu0
    %719 = vdwg.mxu0
    %v721 = vrot.slane %v715, 2
    %v723 = vadd.f32 %v155, %v721
    %v724 = vxor.u32 %v723, 2147483648
    %v725 = vmul.f32 %v724, 1.442695
    %v726 = vpow.pop %v725
    %v727 = vadd.f32 %v726, 1.0
    %v728 = vrcp.pop %v727
    %v729 = vmul.f32 1.0, %v728
    %v731 = vrot.slane %v729, 6
    %733 = vrot.lane.b32.xlu0 %v731, 64
    %v734 = vpop.permute.xlu0 %733
    %v735 = vadd.f32 %v715, %v64
    %v736 = vmul.f32 %v734, %v735
    %v738 = vrot.slane %v736, 2
    %v740 = vadd.f32 %v155, %v738
    %v741 = vtanh.pop %v740
    %742 = vrot.lane.b32.xlu0 %v731, 96
    %v743 = vpop.permute.xlu0 %742
    %v745 = vrot.slane %v741, 1
    %v747 = vsub.f32 %v673, %v745
    %v749 = vrot.slane %v747, 5
    %v751 = vmul.f32 %v743, %v749
    %v753 = vrot.slane %v751, 2
    %v755 = vadd.f32 %v741, %v753
    %v756 = vmul.f32 %v755, %v164
    %v757 = vpack.c.bf16 %v756, %v756
    %v759 = vrot.slane %v757, 3
    %761 = vmatprep.subr.bf16.mxu0 0
    %762 = vmatpush1.bf16.msra.mxu0 %v204
    %763 = vmatprep.subr.bf16.mxu0 0
    %764 = vmatpush1.bf16.msra.mxu0 %v203
    %765 = vmatprep.subr.bf16.mxu0 0
    %766 = vmatpush1.bf16.msra.mxu0 %v202
    %767 = vmatprep.subr.bf16.mxu0 0
    %768 = vmatpush1.bf16.msra.mxu0 %v201
    %769 = vmatprep.subr.bf16.mxu0 0
    %770 = vmatpush1.bf16.msra.mxu0 %v200
    %771 = vmatprep.subr.bf16.mxu0 0
    %772 = vmatpush1.bf16.msra.mxu0 %v199
    %773 = vmatprep.subr.bf16.mxu0 0
    %774 = vmatpush1.bf16.msra.mxu0 %v198
    %775 = vmatprep.subr.bf16.mxu0 0
    %776 = vmatpush1.bf16.msra.mxu0 %v197
    %777 = vmatprep.subr.bf16.mxu0 0
    %778 = vmatpush2.bf16.msra.mxu0 0
    %779 = vmatprep.subr.bf16.mxu0 0
    %780 = vmatpush2.bf16.msra.mxu0 0
    %781 = vmatprep.subr.bf16.mxu0 0
    %782 = vmatpush2.bf16.msra.mxu0 0
    %783 = vmatprep.subr.bf16.mxu0 0
    %784 = vmatpush2.bf16.msra.mxu0 0
    %785 = vmatprep.subr.bf16.mxu0 0
    %786 = vmatpush2.bf16.msra.mxu0 0
    %787 = vmatprep.subr.bf16.mxu0 0
    %788 = vmatpush2.bf16.msra.mxu0 0
    %789 = vmatprep.subr.bf16.mxu0 0
    %790 = vmatpush2.bf16.msra.mxu0 0
    %791 = vmatprep.subr.bf16.mxu0 0
    %792 = vmatpush2.bf16.msra.mxu0 0
    %793 = vmatprep.mubr.bf16.mxu0 0
    %794 = vmatmul.mubr.bf16.gmra.mxu0 %v759
    %v795 = vpop.f32.mrf.mxu0
    %v796 = vadd.f32 0.0, %v795
    %v797 = vpop.f32.mrf.mxu0
    %v798 = vpop.f32.mrf.mxu0
    %v799 = vpop.f32.mrf.mxu0
    %800 = vdwg.mxu0
    %v802 = vrot.slane %v796, 1
    %v804 = vadd.f32 %v155, %v802
    %v805 = vxor.u32 %v804, 2147483648
    %v806 = vmul.f32 %v805, 1.442695
    %v807 = vpow.pop %v806
    %v808 = vadd.f32 %v807, 1.0
    %v809 = vrcp.pop %v808
    %v810 = vmul.f32 1.0, %v809
    %v812 = vrot.slane %v810, 7
    %814 = vrot.lane.b32.xlu0 %v812, 64
    %v815 = vpop.permute.xlu0 %814
    %v816 = vadd.f32 %v796, %v64
    %v817 = vmul.f32 %v815, %v816
    %v819 = vrot.slane %v817, 1
    %v821 = vadd.f32 %v155, %v819
    %v822 = vtanh.pop %v821
    %823 = vrot.lane.b32.xlu0 %v812, 96
    %v824 = vpop.permute.xlu0 %823
    %v826 = vrot.slane %v822, 1
    %v828 = vsub.f32 %v756, %v826
    %v830 = vrot.slane %v828, 6
    %v832 = vmul.f32 %v824, %v830
    %v834 = vrot.slane %v832, 1
    %v836 = vadd.f32 %v822, %v834
    %v837 = vmul.f32 %v836, %v164
    %vm838 = vcmask 1040384
    %v839 = vsel %vm838, %v271, %v346
    %vm840 = vcmask 1041408
    %v841 = vsel %vm840, %v839, %v428
    %vm842 = vcmask 1042432
    %v843 = vsel %vm842, %v841, %v509
    %vm844 = vcmask 1043456
    %v845 = vsel %vm844, %v843, %v592
    %vm846 = vcmask 1044480
    %v847 = vsel %vm846, %v845, %v673
    %vm848 = vcmask 1045504
    %v849 = vsel %vm848, %v847, %v756
    %vm850 = vcmask 1046528
    %v851 = vsel %vm850, %v849, %v837
    %852 = vst [vmem:[%s3] sm:$0xff] %v851
    // Predicated region
    $region18: #{encoder_forward.1} parent=1 // pred_check
      _
    $region19: #{encoder_forward.1} parent=1 // pred_check_branch
      %854 = sbr.rel (0) target = $region21
    $region20: #{encoder_forward.1} parent=1 // pred_region
      _
    $region21: #{encoder_forward.1} parent=1 // pred_fallthru
      _
    // Predicated region
    $region22: #{encoder_forward.1} parent=1 // pred_check
      _
    $region23: #{encoder_forward.1} parent=1 // pred_check_branch
      %856 = sbr.rel (0) target = $region25
    $region24: #{encoder_forward.1} parent=1 // pred_region
      _
    $region25: #{encoder_forward.1} parent=1 // pred_fallthru
      _
    %857 = vsyncpa [#allocation3], 1

</llo_original>
